<compile_context>
chip_gen: v6e
topology: v6e:2x2x1
jax: 0.10.0
libtpu: 0.0.40
codegen_flags: <defaults>
</compile_context>

<pallas_src>
import jax
import jax.numpy as jnp
from jax.experimental import pallas as pl
from jax.experimental.pallas import tpu as pltpu


def _round_up(x, m):
    return ((x + m - 1) // m) * m


def fusion_kernel(t_ref, i_ref, w1_ref, b1_ref, w2_ref, b2_ref, o_ref):
    # Concat folded into a single K = Dt+Di contraction (one MXU pass on the
    # 256-deep MXUs of v6e/v7x instead of two half-width dots).
    fused = jnp.concatenate([t_ref[...], i_ref[...]], axis=1)      # (TM, Dt+Di) bf16
    h = jnp.dot(fused, w1_ref[...],
                preferred_element_type=jnp.float32) + b1_ref[...]  # f32 accumulate
    h = jnp.maximum(h, 0.0)                                        # ReLU in f32
    # Dropout layers are identity in eval mode (no-op here).
    logits = jnp.dot(h.astype(w2_ref.dtype), w2_ref[...],
                     preferred_element_type=jnp.float32) + b2_ref[...]
    o_ref[...] = logits.astype(o_ref.dtype)                        # lane-dense store


def feature_fusion_forward(text_feats, image_feats, w1, b1, w2, b2,
                           *, block_m=128, compute_dtype=jnp.bfloat16):
    """text_feats: (B, Dt), image_feats: (B, Di)
    w1: (Dt+Di, H), b1: (H,), w2: (H, C), b2: (C,)  (weights pre-transposed)."""
    B, Dt = text_feats.shape
    _, Di = image_feats.shape
    Df = Dt + Di
    H = w1.shape[1]
    C = w2.shape[1]

    # --- tiling / padding ----------------------------------------------------
    tm = min(block_m, _round_up(B, 8))        # batch tile (multiple of 8)
    B_pad = _round_up(B, tm)
    C_pad = _round_up(C, 128)                 # lane-dense classifier width

    t = text_feats.astype(compute_dtype)
    im = image_feats.astype(compute_dtype)
    if B_pad != B:
        t = jnp.pad(t, ((0, B_pad - B), (0, 0)))
        im = jnp.pad(im, ((0, B_pad - B), (0, 0)))

    w1c = w1.astype(compute_dtype)                                        # (Df, H) whole
    b1_2d = b1.reshape(1, H).astype(jnp.float32)
    w2c = jnp.pad(w2, ((0, 0), (0, C_pad - C))).astype(compute_dtype)     # zero-filled pad
    b2_2d = jnp.pad(b2, (0, C_pad - C)).reshape(1, C_pad).astype(jnp.float32)

    grid = (B_pad // tm,)

    itemsize = jnp.dtype(compute_dtype).itemsize
    flops = 2 * B_pad * (Df * H + H * C_pad)
    bytes_accessed = (
        (t.size + im.size + w1c.size + w2c.size) * itemsize
        + (b1_2d.size + b2_2d.size + B_pad * C_pad) * 4
    )

    out = pl.pallas_call(
        fusion_kernel,
        out_shape=jax.ShapeDtypeStruct((B_pad, C_pad), jnp.float32),
        grid=grid,
        in_specs=[
            pl.BlockSpec((tm, Dt), lambda i: (i, 0)),      # text tile
            pl.BlockSpec((tm, Di), lambda i: (i, 0)),      # image tile
            pl.BlockSpec((Df, H), lambda i: (0, 0)),       # w1 resident
            pl.BlockSpec((1, H), lambda i: (0, 0)),        # b1 resident
            pl.BlockSpec((H, C_pad), lambda i: (0, 0)),    # w2 resident
            pl.BlockSpec((1, C_pad), lambda i: (0, 0)),    # b2 resident
        ],
        out_specs=pl.BlockSpec((tm, C_pad), lambda i: (i, 0)),
        compiler_params=pltpu.CompilerParams(
            dimension_semantics=("parallel",),
        ),
        cost_estimate=pl.CostEstimate(
            flops=int(flops), transcendentals=0, bytes_accessed=int(bytes_accessed)),
    )(t, im, w1c, b1_2d, w2c, b2_2d)

    return out[:B, :C]


def reference_forward(text_feats, image_feats, w1, b1, w2, b2):
    fused = jnp.concatenate([text_feats, image_feats], axis=1)
    h = jnp.maximum(fused @ w1 + b1, 0.0)
    return h @ w2 + b2


if __name__ == "__main__":
    # Module defaults (already TPU-friendly small sizes).
    B = 8
    TEXT_DIM = 256
    IMAGE_DIM = 256
    HIDDEN = 512
    NUM_CLASSES = 3

    key = jax.random.PRNGKey(0)
    k_t, k_i, k_w1, k_b1, k_w2, k_b2 = jax.random.split(key, 6)

    text_feats = jax.random.normal(k_t, (B, TEXT_DIM), dtype=jnp.float32)
    image_feats = jax.random.normal(k_i, (B, IMAGE_DIM), dtype=jnp.float32)

    # Deterministic parameter init (uniform, roughly PyTorch Linear init scale).
    fusion_dim = TEXT_DIM + IMAGE_DIM
    lim1 = 1.0 / (fusion_dim ** 0.5)
    lim2 = 1.0 / (HIDDEN ** 0.5)
    w1 = jax.random.uniform(k_w1, (fusion_dim, HIDDEN), jnp.float32, -lim1, lim1)
    b1 = jax.random.uniform(k_b1, (HIDDEN,), jnp.float32, -lim1, lim1)
    w2 = jax.random.uniform(k_w2, (HIDDEN, NUM_CLASSES), jnp.float32, -lim2, lim2)
    b2 = jax.random.uniform(k_b2, (NUM_CLASSES,), jnp.float32, -lim2, lim2)

    out = feature_fusion_forward(text_feats, image_feats, w1, b1, w2, b2)
    out = jax.block_until_ready(out)

    # f32 reference; generous tolerance accounts for bf16 matmul inputs
    # (f32 accumulation keeps the error well inside this bound).
    ref_f32 = reference_forward(text_feats, image_feats, w1, b1, w2, b2)
    # bf16-matched reference for a tighter check.
    bf16 = jnp.bfloat16
    fused_bf = jnp.concatenate([text_feats.astype(bf16), image_feats.astype(bf16)], axis=1)
    h_bf = jnp.maximum(
        jnp.dot(fused_bf, w1.astype(bf16), preferred_element_type=jnp.float32) + b1, 0.0)
    ref_bf16 = jnp.dot(h_bf.astype(bf16), w2.astype(bf16),
                       preferred_element_type=jnp.float32) + b2

    assert out.shape == (B, NUM_CLASSES)
    assert jnp.allclose(out, ref_bf16, atol=1e-2, rtol=1e-2), "mismatch vs bf16 reference"
    assert jnp.allclose(out, ref_f32, atol=5e-2, rtol=5e-2), "mismatch vs f32 reference"

    print("KERNEL_OK")
</pallas_src>

<mosaic_0001>
module attributes {stable_mosaic.version = 11 : i64} {
  func.func @fusion_kernel(%arg0: i32, %arg1: memref<8x256xbf16, #tpu.memory_space<vmem>>, %arg2: memref<8x256xbf16, #tpu.memory_space<vmem>>, %arg3: memref<512x512xbf16, #tpu.memory_space<vmem>>, %arg4: memref<1x512xf32, #tpu.memory_space<vmem>>, %arg5: memref<512x128xbf16, #tpu.memory_space<vmem>>, %arg6: memref<1x128xf32, #tpu.memory_space<vmem>>, %arg7: memref<8x128xf32, #tpu.memory_space<vmem>>) attributes {dimension_semantics = [#tpu.dimension_semantics<parallel>], iteration_bounds = array<i64: 1>, scalar_prefetch = 0 : i64, scratch_operands = 0 : i64, tpu.core_type = #tpu.core_type<tc>, window_params = [{transform_indices = @transform_0, window_bounds = array<i64: 8, 256>}, {transform_indices = @transform_1, window_bounds = array<i64: 8, 256>}, {pipeline_mode = #tpu.pipeline_mode<synchronous>, transform_indices = @transform_2, window_bounds = array<i64: 512, 512>}, {pipeline_mode = #tpu.pipeline_mode<synchronous>, transform_indices = @transform_3, window_bounds = array<i64: 1, 512>}, {pipeline_mode = #tpu.pipeline_mode<synchronous>, transform_indices = @transform_4, window_bounds = array<i64: 512, 128>}, {pipeline_mode = #tpu.pipeline_mode<synchronous>, transform_indices = @transform_5, window_bounds = array<i64: 1, 128>}, {transform_indices = @transform_6, window_bounds = array<i64: 8, 128>}]} {
    %c0 = arith.constant 0 : index
    %c0_0 = arith.constant 0 : index
    %0 = vector.load %arg1[%c0, %c0_0] : memref<8x256xbf16, #tpu.memory_space<vmem>>, vector<8x256xbf16>
    %c0_1 = arith.constant 0 : index
    %c0_2 = arith.constant 0 : index
    %1 = vector.load %arg2[%c0_1, %c0_2] : memref<8x256xbf16, #tpu.memory_space<vmem>>, vector<8x256xbf16>
    %2 = tpu.concatenate %0, %1 in 1 : vector<8x256xbf16>, vector<8x256xbf16> -> vector<8x512xbf16>
    %c0_3 = arith.constant 0 : index
    %c0_4 = arith.constant 0 : index
    %3 = vector.load %arg3[%c0_3, %c0_4] : memref<512x512xbf16, #tpu.memory_space<vmem>>, vector<512x512xbf16>
    %cst = arith.constant dense<0.000000e+00> : vector<8x512xf32>
    %4 = tpu.matmul %2, %3, %cst {dimension_numbers = #tpu.dot_dimension_numbers<[1], [0], [0], [1], [0, 0, 1, 1], [], []>} : vector<8x512xbf16>, vector<512x512xbf16>, vector<8x512xf32> -> vector<8x512xf32>
    %c0_5 = arith.constant 0 : index
    %c0_6 = arith.constant 0 : index
    %5 = vector.load %arg4[%c0_5, %c0_6] : memref<1x512xf32, #tpu.memory_space<vmem>>, vector<1x512xf32>
    %6 = vector.broadcast %5 : vector<1x512xf32> to vector<8x512xf32>
    %7 = arith.addf %4, %6 : vector<8x512xf32>
    %cst_7 = arith.constant 0.000000e+00 : f32
    %8 = vector.broadcast %cst_7 : f32 to vector<8x512xf32>
    %9 = arith.maximumf %7, %8 : vector<8x512xf32>
    %10 = arith.truncf %9 : vector<8x512xf32> to vector<8x512xbf16>
    %c0_8 = arith.constant 0 : index
    %c0_9 = arith.constant 0 : index
    %11 = vector.load %arg5[%c0_8, %c0_9] : memref<512x128xbf16, #tpu.memory_space<vmem>>, vector<512x128xbf16>
    %cst_10 = arith.constant dense<0.000000e+00> : vector<8x128xf32>
    %12 = tpu.matmul %10, %11, %cst_10 {dimension_numbers = #tpu.dot_dimension_numbers<[1], [0], [0], [1], [0, 0, 1, 1], [], []>} : vector<8x512xbf16>, vector<512x128xbf16>, vector<8x128xf32> -> vector<8x128xf32>
    %c0_11 = arith.constant 0 : index
    %c0_12 = arith.constant 0 : index
    %13 = vector.load %arg6[%c0_11, %c0_12] : memref<1x128xf32, #tpu.memory_space<vmem>>, vector<1x128xf32>
    %14 = vector.broadcast %13 : vector<1x128xf32> to vector<8x128xf32>
    %15 = arith.addf %12, %14 : vector<8x128xf32>
    %c0_13 = arith.constant 0 : index
    %c0_14 = arith.constant 0 : index
    %16 = vector.load %arg7[%c0_13, %c0_14] : memref<8x128xf32, #tpu.memory_space<vmem>>, vector<8x128xf32>
    tpu.vector_store %arg7[%c0_13, %c0_14], %15 {strides = array<i32>} : memref<8x128xf32, #tpu.memory_space<vmem>>, vector<8x128xf32>,
    return
  }
  func.func @transform_0(%arg0: i32) -> (i32, i32) {
    %c0_i32 = arith.constant 0 : i32
    %c0_i32_0 = arith.constant 0 : i32
    return %arg0, %c0_i32 : i32, i32
  }
  func.func @transform_1(%arg0: i32) -> (i32, i32) {
    %c0_i32 = arith.constant 0 : i32
    %c0_i32_0 = arith.constant 0 : i32
    return %arg0, %c0_i32 : i32, i32
  }
  func.func @transform_2(%arg0: i32) -> (i32, i32) {
    %c0_i32 = arith.constant 0 : i32
    %c0_i32_0 = arith.constant 0 : i32
    %c0_i32_1 = arith.constant 0 : i32
    return %c0_i32, %c0_i32_0 : i32, i32
  }
  func.func @transform_3(%arg0: i32) -> (i32, i32) {
    %c0_i32 = arith.constant 0 : i32
    %c0_i32_0 = arith.constant 0 : i32
    %c0_i32_1 = arith.constant 0 : i32
    return %c0_i32, %c0_i32_0 : i32, i32
  }
  func.func @transform_4(%arg0: i32) -> (i32, i32) {
    %c0_i32 = arith.constant 0 : i32
    %c0_i32_0 = arith.constant 0 : i32
    %c0_i32_1 = arith.constant 0 : i32
    return %c0_i32, %c0_i32_0 : i32, i32
  }
  func.func @transform_5(%arg0: i32) -> (i32, i32) {
    %c0_i32 = arith.constant 0 : i32
    %c0_i32_0 = arith.constant 0 : i32
    %c0_i32_1 = arith.constant 0 : i32
    return %c0_i32, %c0_i32_0 : i32, i32
  }
  func.func @transform_6(%arg0: i32) -> (i32, i32) {
    %c0_i32 = arith.constant 0 : i32
    %c0_i32_0 = arith.constant 0 : i32
    return %arg0, %c0_i32 : i32, i32
  }
}

</mosaic_0001>

<llo_original>
// kernel: tpu_custom_call.1
$region0: #{tpu_custom_call.1}
  #allocation0 [shape = 'u32[]', space=smem, size = 0x4, offset = 0x4, fixed_abs, tag = 'smem constant byte address 0x4 - core index']
  #allocation1 [shape = 'u32[144,128]{1,0:T(1,128)}', space=vmem, size = 0x12000, scoped, tag = 'internal scratch']
  %s0 = inlined_call_operand.hbm [shape: bf16[8,256], index: 0, kind: input, shape index: {}]
  %s1 = inlined_call_operand.hbm [shape: bf16[8,256], index: 1, kind: input, shape index: {}]
  %s2 = inlined_call_operand.hbm [shape: bf16[512,512], index: 2, kind: input, shape index: {}]
  %s3 = inlined_call_operand.vmem [shape: f32[1,512], index: 3, kind: input, shape index: {}]
  %s4 = inlined_call_operand.hbm [shape: bf16[512,128], index: 4, kind: input, shape index: {}]
  %s5 = inlined_call_operand.vmem [shape: f32[1,128], index: 5, kind: input, shape index: {}]
  %s6 = inlined_call_operand.hbm [shape: f32[8,128], index: 6, kind: output, shape index: {}]
  %s7 = sld [smem:[#allocation0]]
  $region50: #{tpu_custom_call.1} parent=0
    _
  %s9 = ssub.s32 1, %s7
  %s10 = scalar_select 0, %s9, %s7
  $region1: #{tpu_custom_call.1} parent=0
    #allocation2 [shape = 'u8[4096]{0}', space=vmem, size = 0x1000, scoped, tag = 'input window, operand 0, single buffered']
    #allocation3 [shape = 's32[1]{0}', space=sflag, size = 0x4, scoped, tag = 'scoped memory for tpu_custom_call.1']
    #allocation4 [shape = 's32[1]{0}', space=sflag, size = 0x4, scoped, tag = 'scoped memory for tpu_custom_call.1']
    #allocation5 [shape = 'u8[4096]{0}', space=vmem, size = 0x1000, scoped, tag = 'input window, operand 1, single buffered']
    #allocation6 [shape = 's32[1]{0}', space=sflag, size = 0x4, scoped, tag = 'scoped memory for tpu_custom_call.1']
    #allocation7 [shape = 'u8[524288]{0}', space=vmem, size = 0x80000, scoped, tag = 'input window, operand 2, single buffered']
    #allocation8 [shape = 'u8[131072]{0}', space=vmem, size = 0x20000, scoped, tag = 'input window, operand 4, single buffered']
    #allocation9 [shape = 's32[1]{0}', space=sflag, size = 0x4, scoped, tag = 'scoped memory for tpu_custom_call.1']
    #allocation10 [shape = 'u8[4096]{0}', space=vmem, size = 0x1000, scoped, tag = 'output window, operand 0, single buffered']
    %11 = vsyncpa [#allocation3], 0
    %12 = vsyncpa [#allocation6], 0
    %13 = vsyncpa [#allocation9], 0
    %14 = vsyncpa [#allocation4], 0
    // Predicated region
    $region2: #{tpu_custom_call.1} parent=1 // pred_check
      _
    $region3: #{tpu_custom_call.1} parent=1 // pred_check_branch
      %16 = sbr.rel (0) target = $region5
    $region4: #{tpu_custom_call.1} parent=1 // pred_region
      %s18 = ssub.s32 128, 128
      %19 = vsyncadd [#allocation3], %s18
      %s21 = sshll.u32 [#allocation2], 4
      %s22 = int_to_ptr.vmem [resolvable:$true] %s21
      %24 = dma.hbm_to_vmem [thread:$0]  %s0, 128, %s22, [#allocation3]
    $region5: #{tpu_custom_call.1} parent=1 // pred_fallthru
      _
    // Predicated region
    $region6: #{tpu_custom_call.1} parent=1 // pred_check
      _
    $region7: #{tpu_custom_call.1} parent=1 // pred_check_branch
      %26 = sbr.rel (0) target = $region9
    $region8: #{tpu_custom_call.1} parent=1 // pred_region
      %s28 = ssub.s32 128, 128
      %29 = vsyncadd [#allocation6], %s28
      %s31 = sshll.u32 [#allocation5], 4
      %s32 = int_to_ptr.vmem [resolvable:$true] %s31
      %34 = dma.hbm_to_vmem [thread:$0]  %s1, 128, %s32, [#allocation6]
    $region9: #{tpu_custom_call.1} parent=1 // pred_fallthru
      _
    // Predicated region
    $region10: #{tpu_custom_call.1} parent=1 // pred_check
      _
    $region11: #{tpu_custom_call.1} parent=1 // pred_check_branch
      %36 = sbr.rel (0) target = $region13
    $region12: #{tpu_custom_call.1} parent=1 // pred_region
      %s38 = ssub.s32 16384, 16384
      %39 = vsyncadd [#allocation6], %s38
      %s40 = sshll.u32 [#allocation7], 4
      %s41 = int_to_ptr.vmem [resolvable:$true] %s40
      %46 = dma.hbm_to_vmem [thread:$0]  %s2, 16384, %s41, [#allocation6], 256, 256, 16
    $region13: #{tpu_custom_call.1} parent=1 // pred_fallthru
      _
    // Predicated region
    $region14: #{tpu_custom_call.1} parent=1 // pred_check
      _
    $region15: #{tpu_custom_call.1} parent=1 // pred_check_branch
      %48 = sbr.rel (0) target = $region17
    $region16: #{tpu_custom_call.1} parent=1 // pred_region
      _
    $region17: #{tpu_custom_call.1} parent=1 // pred_fallthru
      _
    // Predicated region
    $region18: #{tpu_custom_call.1} parent=1 // pred_check
      _
    $region19: #{tpu_custom_call.1} parent=1 // pred_check_branch
      %50 = sbr.rel (0) target = $region21
    $region20: #{tpu_custom_call.1} parent=1 // pred_region
      %s52 = ssub.s32 4096, 4096
      %53 = vsyncadd [#allocation9], %s52
      %s54 = sshll.u32 [#allocation8], 4
      %s55 = int_to_ptr.vmem [resolvable:$true] %s54
      %60 = dma.hbm_to_vmem [thread:$0]  %s4, 4096, %s55, [#allocation9], 64, 64, 4
    $region21: #{tpu_custom_call.1} parent=1 // pred_fallthru
      _
    // Predicated region
    $region22: #{tpu_custom_call.1} parent=1 // pred_check
      _
    $region23: #{tpu_custom_call.1} parent=1 // pred_check_branch
      %62 = sbr.rel (0) target = $region25
    $region24: #{tpu_custom_call.1} parent=1 // pred_region
      _
    $region25: #{tpu_custom_call.1} parent=1 // pred_fallthru
      _
    // Predicated region
    $region26: #{tpu_custom_call.1} parent=1 // pred_check
      _
    $region27: #{tpu_custom_call.1} parent=1 // pred_check_branch
      %64 = sbr.rel (0) target = $region29
    $region28: #{tpu_custom_call.1} parent=1 // pred_region
      %65 = dma.done [#allocation3], 128
    $region29: #{tpu_custom_call.1} parent=1 // pred_fallthru
      _
    // Predicated region
    $region30: #{tpu_custom_call.1} parent=1 // pred_check
      _
    $region31: #{tpu_custom_call.1} parent=1 // pred_check_branch
      %67 = sbr.rel (0) target = $region33
    $region32: #{tpu_custom_call.1} parent=1 // pred_region
      %68 = dma.done [#allocation6], 128
    $region33: #{tpu_custom_call.1} parent=1 // pred_fallthru
      _
    // Predicated region
    $region34: #{tpu_custom_call.1} parent=1 // pred_check
      _
    $region35: #{tpu_custom_call.1} parent=1 // pred_check_branch
      %70 = sbr.rel (0) target = $region37
    $region36: #{tpu_custom_call.1} parent=1 // pred_region
      %71 = dma.done [#allocation6], 16384
    $region37: #{tpu_custom_call.1} parent=1 // pred_fallthru
      _
    // Predicated region
    $region38: #{tpu_custom_call.1} parent=1 // pred_check
      _
    $region39: #{tpu_custom_call.1} parent=1 // pred_check_branch
      %73 = sbr.rel (0) target = $region41
    $region40: #{tpu_custom_call.1} parent=1 // pred_region
      %74 = dma.done [#allocation9], 4096
    $region41: #{tpu_custom_call.1} parent=1 // pred_fallthru
      _
    %v76 = vld [vmem:[#allocation2] sm:$0xff]
    %v77 = vld [vmem:[#allocation5] sm:$0xff]
    %v79 = vunpack.c.l.b16 %v76
    %v80 = vunpack.c.h.b16 %v76
    %v81 = vpack.c.b16 %v79, %v79
    %v82 = vpack.c.b16 %v80, %v80
    %v86 = vunpack.c.l.b16 %v77
    %v87 = vunpack.c.h.b16 %v77
    %v88 = vpack.c.b16 %v86, %v86
    %v89 = vpack.c.b16 %v87, %v87
    %v92 = vld [vmem:[#allocation7] sm:$0xff]
    %v93 = vld [vmem:[#allocation7 + $0x8] sm:$0xff]
    %v94 = vld [vmem:[#allocation7 + $0x10] sm:$0xff]
    %v95 = vld [vmem:[#allocation7 + $0x18] sm:$0xff]
    %v96 = vld [vmem:[#allocation7 + $0x20] sm:$0xff]
    %v97 = vld [vmem:[#allocation7 + $0x28] sm:$0xff]
    %v98 = vld [vmem:[#allocation7 + $0x30] sm:$0xff]
    %v99 = vld [vmem:[#allocation7 + $0x38] sm:$0xff]
    %v100 = vld [vmem:[#allocation7 + $0x40] sm:$0xff]
    %v101 = vld [vmem:[#allocation7 + $0x48] sm:$0xff]
    %v102 = vld [vmem:[#allocation7 + $0x50] sm:$0xff]
    %v103 = vld [vmem:[#allocation7 + $0x58] sm:$0xff]
    %v104 = vld [vmem:[#allocation7 + $0x60] sm:$0xff]
    %v105 = vld [vmem:[#allocation7 + $0x68] sm:$0xff]
    %v106 = vld [vmem:[#allocation7 + $0x70] sm:$0xff]
    %v107 = vld [vmem:[#allocation7 + $0x78] sm:$0xff]
    %v108 = vld [vmem:[#allocation7 + $0x80] sm:$0xff]
    %v109 = vld [vmem:[#allocation7 + $0x88] sm:$0xff]
    %v110 = vld [vmem:[#allocation7 + $0x90] sm:$0xff]
    %v111 = vld [vmem:[#allocation7 + $0x98] sm:$0xff]
    %v112 = vld [vmem:[#allocation7 + $0xa0] sm:$0xff]
    %v113 = vld [vmem:[#allocation7 + $0xa8] sm:$0xff]
    %v114 = vld [vmem:[#allocation7 + $0xb0] sm:$0xff]
    %v115 = vld [vmem:[#allocation7 + $0xb8] sm:$0xff]
    %v116 = vld [vmem:[#allocation7 + $0xc0] sm:$0xff]
    %v117 = vld [vmem:[#allocation7 + $0xc8] sm:$0xff]
    %v118 = vld [vmem:[#allocation7 + $0xd0] sm:$0xff]
    %v119 = vld [vmem:[#allocation7 + $0xd8] sm:$0xff]
    %v120 = vld [vmem:[#allocation7 + $0xe0] sm:$0xff]
    %v121 = vld [vmem:[#allocation7 + $0xe8] sm:$0xff]
    %v122 = vld [vmem:[#allocation7 + $0xf0] sm:$0xff]
    %v123 = vld [vmem:[#allocation7 + $0xf8] sm:$0xff]
    %v124 = vld [vmem:[#allocation7 + $0x100] sm:$0xff]
    %v125 = vld [vmem:[#allocation7 + $0x108] sm:$0xff]
    %v126 = vld [vmem:[#allocation7 + $0x110] sm:$0xff]
    %v127 = vld [vmem:[#allocation7 + $0x118] sm:$0xff]
    %v128 = vld [vmem:[#allocation7 + $0x120] sm:$0xff]
    %v129 = vld [vmem:[#allocation7 + $0x128] sm:$0xff]
    %v130 = vld [vmem:[#allocation7 + $0x130] sm:$0xff]
    %v131 = vld [vmem:[#allocation7 + $0x138] sm:$0xff]
    %v132 = vld [vmem:[#allocation7 + $0x140] sm:$0xff]
    %v133 = vld [vmem:[#allocation7 + $0x148] sm:$0xff]
    %v134 = vld [vmem:[#allocation7 + $0x150] sm:$0xff]
    %v135 = vld [vmem:[#allocation7 + $0x158] sm:$0xff]
    %v136 = vld [vmem:[#allocation7 + $0x160] sm:$0xff]
    %v137 = vld [vmem:[#allocation7 + $0x168] sm:$0xff]
    %v138 = vld [vmem:[#allocation7 + $0x170] sm:$0xff]
    %v139 = vld [vmem:[#allocation7 + $0x178] sm:$0xff]
    %v140 = vld [vmem:[#allocation7 + $0x180] sm:$0xff]
    %v141 = vld [vmem:[#allocation7 + $0x188] sm:$0xff]
    %v142 = vld [vmem:[#allocation7 + $0x190] sm:$0xff]
    %v143 = vld [vmem:[#allocation7 + $0x198] sm:$0xff]
    %v144 = vld [vmem:[#allocation7 + $0x1a0] sm:$0xff]
    %v145 = vld [vmem:[#allocation7 + $0x1a8] sm:$0xff]
    %v146 = vld [vmem:[#allocation7 + $0x1b0] sm:$0xff]
    %v147 = vld [vmem:[#allocation7 + $0x1b8] sm:$0xff]
    %v148 = vld [vmem:[#allocation7 + $0x1c0] sm:$0xff]
    %v149 = vld [vmem:[#allocation7 + $0x1c8] sm:$0xff]
    %v150 = vld [vmem:[#allocation7 + $0x1d0] sm:$0xff]
    %v151 = vld [vmem:[#allocation7 + $0x1d8] sm:$0xff]
    %v152 = vld [vmem:[#allocation7 + $0x1e0] sm:$0xff]
    %v153 = vld [vmem:[#allocation7 + $0x1e8] sm:$0xff]
    %v154 = vld [vmem:[#allocation7 + $0x1f0] sm:$0xff]
    %v155 = vld [vmem:[#allocation7 + $0x1f8] sm:$0xff]
    %v156 = vld [vmem:[#allocation7 + $0x200] sm:$0xff]
    %v157 = vld [vmem:[#allocation7 + $0x208] sm:$0xff]
    %v158 = vld [vmem:[#allocation7 + $0x210] sm:$0xff]
    %v159 = vld [vmem:[#allocation7 + $0x218] sm:$0xff]
    %v160 = vld [vmem:[#allocation7 + $0x220] sm:$0xff]
    %v161 = vld [vmem:[#allocation7 + $0x228] sm:$0xff]
    %v162 = vld [vmem:[#allocation7 + $0x230] sm:$0xff]
    %v163 = vld [vmem:[#allocation7 + $0x238] sm:$0xff]
    %v164 = vld [vmem:[#allocation7 + $0x240] sm:$0xff]
    %v165 = vld [vmem:[#allocation7 + $0x248] sm:$0xff]
    %v166 = vld [vmem:[#allocation7 + $0x250] sm:$0xff]
    %v167 = vld [vmem:[#allocation7 + $0x258] sm:$0xff]
    %v168 = vld [vmem:[#allocation7 + $0x260] sm:$0xff]
    %v169 = vld [vmem:[#allocation7 + $0x268] sm:$0xff]
    %v170 = vld [vmem:[#allocation7 + $0x270] sm:$0xff]
    %v171 = vld [vmem:[#allocation7 + $0x278] sm:$0xff]
    %v172 = vld [vmem:[#allocation7 + $0x280] sm:$0xff]
    %v173 = vld [vmem:[#allocation7 + $0x288] sm:$0xff]
    %v174 = vld [vmem:[#allocation7 + $0x290] sm:$0xff]
    %v175 = vld [vmem:[#allocation7 + $0x298] sm:$0xff]
    %v176 = vld [vmem:[#allocation7 + $0x2a0] sm:$0xff]
    %v177 = vld [vmem:[#allocation7 + $0x2a8] sm:$0xff]
    %v178 = vld [vmem:[#allocation7 + $0x2b0] sm:$0xff]
    %v179 = vld [vmem:[#allocation7 + $0x2b8] sm:$0xff]
    %v180 = vld [vmem:[#allocation7 + $0x2c0] sm:$0xff]
    %v181 = vld [vmem:[#allocation7 + $0x2c8] sm:$0xff]
    %v182 = vld [vmem:[#allocation7 + $0x2d0] sm:$0xff]
    %v183 = vld [vmem:[#allocation7 + $0x2d8] sm:$0xff]
    %v184 = vld [vmem:[#allocation7 + $0x2e0] sm:$0xff]
    %v185 = vld [vmem:[#allocation7 + $0x2e8] sm:$0xff]
    %v186 = vld [vmem:[#allocation7 + $0x2f0] sm:$0xff]
    %v187 = vld [vmem:[#allocation7 + $0x2f8] sm:$0xff]
    %v188 = vld [vmem:[#allocation7 + $0x300] sm:$0xff]
    %v189 = vld [vmem:[#allocation7 + $0x308] sm:$0xff]
    %v190 = vld [vmem:[#allocation7 + $0x310] sm:$0xff]
    %v191 = vld [vmem:[#allocation7 + $0x318] sm:$0xff]
    %v192 = vld [vmem:[#allocation7 + $0x320] sm:$0xff]
    %v193 = vld [vmem:[#allocation7 + $0x328] sm:$0xff]
    %v194 = vld [vmem:[#allocation7 + $0x330] sm:$0xff]
    %v195 = vld [vmem:[#allocation7 + $0x338] sm:$0xff]
    %v196 = vld [vmem:[#allocation7 + $0x340] sm:$0xff]
    %v197 = vld [vmem:[#allocation7 + $0x348] sm:$0xff]
    %v198 = vld [vmem:[#allocation7 + $0x350] sm:$0xff]
    %v199 = vld [vmem:[#allocation7 + $0x358] sm:$0xff]
    %v200 = vld [vmem:[#allocation7 + $0x360] sm:$0xff]
    %v201 = vld [vmem:[#allocation7 + $0x368] sm:$0xff]
    %v202 = vld [vmem:[#allocation7 + $0x370] sm:$0xff]
    %v203 = vld [vmem:[#allocation7 + $0x378] sm:$0xff]
    %v204 = vld [vmem:[#allocation7 + $0x380] sm:$0xff]
    %v205 = vld [vmem:[#allocation7 + $0x388] sm:$0xff]
    %v206 = vld [vmem:[#allocation7 + $0x390] sm:$0xff]
    %v207 = vld [vmem:[#allocation7 + $0x398] sm:$0xff]
    %v208 = vld [vmem:[#allocation7 + $0x3a0] sm:$0xff]
    %v209 = vld [vmem:[#allocation7 + $0x3a8] sm:$0xff]
    %v210 = vld [vmem:[#allocation7 + $0x3b0] sm:$0xff]
    %v211 = vld [vmem:[#allocation7 + $0x3b8] sm:$0xff]
    %v212 = vld [vmem:[#allocation7 + $0x3c0] sm:$0xff]
    %v213 = vld [vmem:[#allocation7 + $0x3c8] sm:$0xff]
    %v214 = vld [vmem:[#allocation7 + $0x3d0] sm:$0xff]
    %v215 = vld [vmem:[#allocation7 + $0x3d8] sm:$0xff]
    %v216 = vld [vmem:[#allocation7 + $0x3e0] sm:$0xff]
    %v217 = vld [vmem:[#allocation7 + $0x3e8] sm:$0xff]
    %v218 = vld [vmem:[#allocation7 + $0x3f0] sm:$0xff]
    %v219 = vld [vmem:[#allocation7 + $0x3f8] sm:$0xff]
    %v220 = vld [vmem:[%s3] sm:$0xf]
    %v222 = vlaneseq
    %v223 = vshrl.u32 %v222, 7
    %v224 = vsub.s32 0, %v223
    %v225 = vrot.slane %v220, %v224
    %v226 = vlaneseq
    %v227 = vshrl.u32 %v226, 7
    %v228 = vsub.s32 1, %v227
    %v229 = vrot.slane %v220, %v228
    %v230 = vlaneseq
    %v231 = vshrl.u32 %v230, 7
    %v232 = vsub.s32 2, %v231
    %v233 = vrot.slane %v220, %v232
    %v234 = vlaneseq
    %v235 = vshrl.u32 %v234, 7
    %v236 = vsub.s32 3, %v235
    %v237 = vrot.slane %v220, %v236
    %v370 = vunpack.c.l.b16 %v92
    %v371 = vunpack.c.h.b16 %v92
    %v372 = vunpack.c.l.b16 %v93
    %v373 = vunpack.c.h.b16 %v93
    %v374 = vunpack.c.l.b16 %v94
    %v375 = vunpack.c.h.b16 %v94
    %v376 = vunpack.c.l.b16 %v95
    %v377 = vunpack.c.h.b16 %v95
    %v378 = vunpack.c.l.b16 %v96
    %v379 = vunpack.c.h.b16 %v96
    %v380 = vunpack.c.l.b16 %v97
    %v381 = vunpack.c.h.b16 %v97
    %v382 = vunpack.c.l.b16 %v98
    %v383 = vunpack.c.h.b16 %v98
    %v384 = vunpack.c.l.b16 %v99
    %v385 = vunpack.c.h.b16 %v99
    %v386 = vunpack.c.l.b16 %v100
    %v387 = vunpack.c.h.b16 %v100
    %v388 = vunpack.c.l.b16 %v101
    %v389 = vunpack.c.h.b16 %v101
    %v390 = vunpack.c.l.b16 %v102
    %v391 = vunpack.c.h.b16 %v102
    %v392 = vunpack.c.l.b16 %v103
    %v393 = vunpack.c.h.b16 %v103
    %v394 = vunpack.c.l.b16 %v104
    %v395 = vunpack.c.h.b16 %v104
    %v396 = vunpack.c.l.b16 %v105
    %v397 = vunpack.c.h.b16 %v105
    %v398 = vunpack.c.l.b16 %v106
    %v399 = vunpack.c.h.b16 %v106
    %v400 = vunpack.c.l.b16 %v107
    %v401 = vunpack.c.h.b16 %v107
    %v402 = vunpack.c.l.b16 %v108
    %v403 = vunpack.c.h.b16 %v108
    %v404 = vunpack.c.l.b16 %v109
    %v405 = vunpack.c.h.b16 %v109
    %v406 = vunpack.c.l.b16 %v110
    %v407 = vunpack.c.h.b16 %v110
    %v408 = vunpack.c.l.b16 %v111
    %v409 = vunpack.c.h.b16 %v111
    %v410 = vunpack.c.l.b16 %v112
    %v411 = vunpack.c.h.b16 %v112
    %v412 = vunpack.c.l.b16 %v113
    %v413 = vunpack.c.h.b16 %v113
    %v414 = vunpack.c.l.b16 %v114
    %v415 = vunpack.c.h.b16 %v114
    %v416 = vunpack.c.l.b16 %v115
    %v417 = vunpack.c.h.b16 %v115
    %v418 = vunpack.c.l.b16 %v116
    %v419 = vunpack.c.h.b16 %v116
    %v420 = vunpack.c.l.b16 %v117
    %v421 = vunpack.c.h.b16 %v117
    %v422 = vunpack.c.l.b16 %v118
    %v423 = vunpack.c.h.b16 %v118
    %v424 = vunpack.c.l.b16 %v119
    %v425 = vunpack.c.h.b16 %v119
    %v426 = vunpack.c.l.b16 %v120
    %v427 = vunpack.c.h.b16 %v120
    %v428 = vunpack.c.l.b16 %v121
    %v429 = vunpack.c.h.b16 %v121
    %v430 = vunpack.c.l.b16 %v122
    %v431 = vunpack.c.h.b16 %v122
    %v432 = vunpack.c.l.b16 %v123
    %v433 = vunpack.c.h.b16 %v123
    %v434 = vunpack.c.l.b16 %v124
    %v435 = vunpack.c.h.b16 %v124
    %v436 = vunpack.c.l.b16 %v125
    %v437 = vunpack.c.h.b16 %v125
    %v438 = vunpack.c.l.b16 %v126
    %v439 = vunpack.c.h.b16 %v126
    %v440 = vunpack.c.l.b16 %v127
    %v441 = vunpack.c.h.b16 %v127
    %v442 = vunpack.c.l.b16 %v128
    %v443 = vunpack.c.h.b16 %v128
    %v444 = vunpack.c.l.b16 %v129
    %v445 = vunpack.c.h.b16 %v129
    %v446 = vunpack.c.l.b16 %v130
    %v447 = vunpack.c.h.b16 %v130
    %v448 = vunpack.c.l.b16 %v131
    %v449 = vunpack.c.h.b16 %v131
    %v450 = vunpack.c.l.b16 %v132
    %v451 = vunpack.c.h.b16 %v132
    %v452 = vunpack.c.l.b16 %v133
    %v453 = vunpack.c.h.b16 %v133
    %v454 = vunpack.c.l.b16 %v134
    %v455 = vunpack.c.h.b16 %v134
    %v456 = vunpack.c.l.b16 %v135
    %v457 = vunpack.c.h.b16 %v135
    %v458 = vunpack.c.l.b16 %v136
    %v459 = vunpack.c.h.b16 %v136
    %v460 = vunpack.c.l.b16 %v137
    %v461 = vunpack.c.h.b16 %v137
    %v462 = vunpack.c.l.b16 %v138
    %v463 = vunpack.c.h.b16 %v138
    %v464 = vunpack.c.l.b16 %v139
    %v465 = vunpack.c.h.b16 %v139
    %v466 = vunpack.c.l.b16 %v140
    %v467 = vunpack.c.h.b16 %v140
    %v468 = vunpack.c.l.b16 %v141
    %v469 = vunpack.c.h.b16 %v141
    %v470 = vunpack.c.l.b16 %v142
    %v471 = vunpack.c.h.b16 %v142
    %v472 = vunpack.c.l.b16 %v143
    %v473 = vunpack.c.h.b16 %v143
    %v474 = vunpack.c.l.b16 %v144
    %v475 = vunpack.c.h.b16 %v144
    %v476 = vunpack.c.l.b16 %v145
    %v477 = vunpack.c.h.b16 %v145
    %v478 = vunpack.c.l.b16 %v146
    %v479 = vunpack.c.h.b16 %v146
    %v480 = vunpack.c.l.b16 %v147
    %v481 = vunpack.c.h.b16 %v147
    %v482 = vunpack.c.l.b16 %v148
    %v483 = vunpack.c.h.b16 %v148
    %v484 = vunpack.c.l.b16 %v149
    %v485 = vunpack.c.h.b16 %v149
    %v486 = vunpack.c.l.b16 %v150
    %v487 = vunpack.c.h.b16 %v150
    %v488 = vunpack.c.l.b16 %v151
    %v489 = vunpack.c.h.b16 %v151
    %v490 = vunpack.c.l.b16 %v152
    %v491 = vunpack.c.h.b16 %v152
    %v492 = vunpack.c.l.b16 %v153
    %v493 = vunpack.c.h.b16 %v153
    %v494 = vunpack.c.l.b16 %v154
    %v495 = vunpack.c.h.b16 %v154
    %v496 = vunpack.c.l.b16 %v155
    %v497 = vunpack.c.h.b16 %v155
    %v498 = vunpack.c.l.b16 %v156
    %v499 = vunpack.c.h.b16 %v156
    %v500 = vunpack.c.l.b16 %v157
    %v501 = vunpack.c.h.b16 %v157
    %v502 = vunpack.c.l.b16 %v158
    %v503 = vunpack.c.h.b16 %v158
    %v504 = vunpack.c.l.b16 %v159
    %v505 = vunpack.c.h.b16 %v159
    %v506 = vunpack.c.l.b16 %v160
    %v507 = vunpack.c.h.b16 %v160
    %v508 = vunpack.c.l.b16 %v161
    %v509 = vunpack.c.h.b16 %v161
    %v510 = vunpack.c.l.b16 %v162
    %v511 = vunpack.c.h.b16 %v162
    %v512 = vunpack.c.l.b16 %v163
    %v513 = vunpack.c.h.b16 %v163
    %v514 = vunpack.c.l.b16 %v164
    %v515 = vunpack.c.h.b16 %v164
    %v516 = vunpack.c.l.b16 %v165
    %v517 = vunpack.c.h.b16 %v165
    %v518 = vunpack.c.l.b16 %v166
    %v519 = vunpack.c.h.b16 %v166
    %v520 = vunpack.c.l.b16 %v167
    %v521 = vunpack.c.h.b16 %v167
    %v522 = vunpack.c.l.b16 %v168
    %v523 = vunpack.c.h.b16 %v168
    %v524 = vunpack.c.l.b16 %v169
    %v525 = vunpack.c.h.b16 %v169
    %v526 = vunpack.c.l.b16 %v170
    %v527 = vunpack.c.h.b16 %v170
    %v528 = vunpack.c.l.b16 %v171
    %v529 = vunpack.c.h.b16 %v171
    %v530 = vunpack.c.l.b16 %v172
    %v531 = vunpack.c.h.b16 %v172
    %v532 = vunpack.c.l.b16 %v173
    %v533 = vunpack.c.h.b16 %v173
    %v534 = vunpack.c.l.b16 %v174
    %v535 = vunpack.c.h.b16 %v174
    %v536 = vunpack.c.l.b16 %v175
    %v537 = vunpack.c.h.b16 %v175
    %v538 = vunpack.c.l.b16 %v176
    %v539 = vunpack.c.h.b16 %v176
    %v540 = vunpack.c.l.b16 %v177
    %v541 = vunpack.c.h.b16 %v177
    %v542 = vunpack.c.l.b16 %v178
    %v543 = vunpack.c.h.b16 %v178
    %v544 = vunpack.c.l.b16 %v179
    %v545 = vunpack.c.h.b16 %v179
    %v546 = vunpack.c.l.b16 %v180
    %v547 = vunpack.c.h.b16 %v180
    %v548 = vunpack.c.l.b16 %v181
    %v549 = vunpack.c.h.b16 %v181
    %v550 = vunpack.c.l.b16 %v182
    %v551 = vunpack.c.h.b16 %v182
    %v552 = vunpack.c.l.b16 %v183
    %v553 = vunpack.c.h.b16 %v183
    %v554 = vunpack.c.l.b16 %v184
    %v555 = vunpack.c.h.b16 %v184
    %v556 = vunpack.c.l.b16 %v185
    %v557 = vunpack.c.h.b16 %v185
    %v558 = vunpack.c.l.b16 %v186
    %v559 = vunpack.c.h.b16 %v186
    %v560 = vunpack.c.l.b16 %v187
    %v561 = vunpack.c.h.b16 %v187
    %v562 = vunpack.c.l.b16 %v188
    %v563 = vunpack.c.h.b16 %v188
    %v564 = vunpack.c.l.b16 %v189
    %v565 = vunpack.c.h.b16 %v189
    %v566 = vunpack.c.l.b16 %v190
    %v567 = vunpack.c.h.b16 %v190
    %v568 = vunpack.c.l.b16 %v191
    %v569 = vunpack.c.h.b16 %v191
    %v570 = vunpack.c.l.b16 %v192
    %v571 = vunpack.c.h.b16 %v192
    %v572 = vunpack.c.l.b16 %v193
    %v573 = vunpack.c.h.b16 %v193
    %v574 = vunpack.c.l.b16 %v194
    %v575 = vunpack.c.h.b16 %v194
    %v576 = vunpack.c.l.b16 %v195
    %v577 = vunpack.c.h.b16 %v195
    %v578 = vunpack.c.l.b16 %v196
    %v579 = vunpack.c.h.b16 %v196
    %v580 = vunpack.c.l.b16 %v197
    %v581 = vunpack.c.h.b16 %v197
    %v582 = vunpack.c.l.b16 %v198
    %v583 = vunpack.c.h.b16 %v198
    %v584 = vunpack.c.l.b16 %v199
    %v585 = vunpack.c.h.b16 %v199
    %v586 = vunpack.c.l.b16 %v200
    %v587 = vunpack.c.h.b16 %v200
    %v588 = vunpack.c.l.b16 %v201
    %v589 = vunpack.c.h.b16 %v201
    %v590 = vunpack.c.l.b16 %v202
    %v591 = vunpack.c.h.b16 %v202
    %v592 = vunpack.c.l.b16 %v203
    %v593 = vunpack.c.h.b16 %v203
    %v594 = vunpack.c.l.b16 %v204
    %v595 = vunpack.c.h.b16 %v204
    %v596 = vunpack.c.l.b16 %v205
    %v597 = vunpack.c.h.b16 %v205
    %v598 = vunpack.c.l.b16 %v206
    %v599 = vunpack.c.h.b16 %v206
    %v600 = vunpack.c.l.b16 %v207
    %v601 = vunpack.c.h.b16 %v207
    %v602 = vunpack.c.l.b16 %v208
    %v603 = vunpack.c.h.b16 %v208
    %v604 = vunpack.c.l.b16 %v209
    %v605 = vunpack.c.h.b16 %v209
    %v606 = vunpack.c.l.b16 %v210
    %v607 = vunpack.c.h.b16 %v210
    %v608 = vunpack.c.l.b16 %v211
    %v609 = vunpack.c.h.b16 %v211
    %v610 = vunpack.c.l.b16 %v212
    %v611 = vunpack.c.h.b16 %v212
    %v612 = vunpack.c.l.b16 %v213
    %v613 = vunpack.c.h.b16 %v213
    %v614 = vunpack.c.l.b16 %v214
    %v615 = vunpack.c.h.b16 %v214
    %v616 = vunpack.c.l.b16 %v215
    %v617 = vunpack.c.h.b16 %v215
    %v618 = vunpack.c.l.b16 %v216
    %v619 = vunpack.c.h.b16 %v216
    %v620 = vunpack.c.l.b16 %v217
    %v621 = vunpack.c.h.b16 %v217
    %v622 = vunpack.c.l.b16 %v218
    %v623 = vunpack.c.h.b16 %v218
    %v624 = vunpack.c.l.b16 %v219
    %v625 = vunpack.c.h.b16 %v219
    %v626 = vpack.c.b16 %v374, %v370
    %v627 = vpack.c.b16 %v375, %v371
    %v628 = vpack.c.b16 %v376, %v372
    %v629 = vpack.c.b16 %v377, %v373
    %v630 = vpack.c.b16 %v382, %v378
    %v631 = vpack.c.b16 %v383, %v379
    %v632 = vpack.c.b16 %v384, %v380
    %v633 = vpack.c.b16 %v385, %v381
    %v634 = vpack.c.b16 %v390, %v386
    %v635 = vpack.c.b16 %v391, %v387
    %v636 = vpack.c.b16 %v392, %v388
    %v637 = vpack.c.b16 %v393, %v389
    %v638 = vpack.c.b16 %v398, %v394
    %v639 = vpack.c.b16 %v399, %v395
    %v640 = vpack.c.b16 %v400, %v396
    %v641 = vpack.c.b16 %v401, %v397
    %v642 = vpack.c.b16 %v406, %v402
    %v643 = vpack.c.b16 %v407, %v403
    %v644 = vpack.c.b16 %v408, %v404
    %v645 = vpack.c.b16 %v409, %v405
    %v646 = vpack.c.b16 %v414, %v410
    %v647 = vpack.c.b16 %v415, %v411
    %v648 = vpack.c.b16 %v416, %v412
    %v649 = vpack.c.b16 %v417, %v413
    %v650 = vpack.c.b16 %v422, %v418
    %v651 = vpack.c.b16 %v423, %v419
    %v652 = vpack.c.b16 %v424, %v420
    %v653 = vpack.c.b16 %v425, %v421
    %v654 = vpack.c.b16 %v430, %v426
    %v655 = vpack.c.b16 %v431, %v427
    %v656 = vpack.c.b16 %v432, %v428
    %v657 = vpack.c.b16 %v433, %v429
    %v658 = vpack.c.b16 %v438, %v434
    %v659 = vpack.c.b16 %v439, %v435
    %v660 = vpack.c.b16 %v440, %v436
    %v661 = vpack.c.b16 %v441, %v437
    %v662 = vpack.c.b16 %v446, %v442
    %v663 = vpack.c.b16 %v447, %v443
    %v664 = vpack.c.b16 %v448, %v444
    %v665 = vpack.c.b16 %v449, %v445
    %v666 = vpack.c.b16 %v454, %v450
    %v667 = vpack.c.b16 %v455, %v451
    %v668 = vpack.c.b16 %v456, %v452
    %v669 = vpack.c.b16 %v457, %v453
    %v670 = vpack.c.b16 %v462, %v458
    %v671 = vpack.c.b16 %v463, %v459
    %v672 = vpack.c.b16 %v464, %v460
    %v673 = vpack.c.b16 %v465, %v461
    %v674 = vpack.c.b16 %v470, %v466
    %v675 = vpack.c.b16 %v471, %v467
    %v676 = vpack.c.b16 %v472, %v468
    %v677 = vpack.c.b16 %v473, %v469
    %v678 = vpack.c.b16 %v478, %v474
    %v679 = vpack.c.b16 %v479, %v475
    %v680 = vpack.c.b16 %v480, %v476
    %v681 = vpack.c.b16 %v481, %v477
    %v682 = vpack.c.b16 %v486, %v482
    %v683 = vpack.c.b16 %v487, %v483
    %v684 = vpack.c.b16 %v488, %v484
    %v685 = vpack.c.b16 %v489, %v485
    %v686 = vpack.c.b16 %v494, %v490
    %v687 = vpack.c.b16 %v495, %v491
    %v688 = vpack.c.b16 %v496, %v492
    %v689 = vpack.c.b16 %v497, %v493
    %v690 = vpack.c.b16 %v502, %v498
    %v691 = vpack.c.b16 %v503, %v499
    %v692 = vpack.c.b16 %v504, %v500
    %v693 = vpack.c.b16 %v505, %v501
    %v694 = vpack.c.b16 %v510, %v506
    %v695 = vpack.c.b16 %v511, %v507
    %v696 = vpack.c.b16 %v512, %v508
    %v697 = vpack.c.b16 %v513, %v509
    %v698 = vpack.c.b16 %v518, %v514
    %v699 = vpack.c.b16 %v519, %v515
    %v700 = vpack.c.b16 %v520, %v516
    %v701 = vpack.c.b16 %v521, %v517
    %v702 = vpack.c.b16 %v526, %v522
    %v703 = vpack.c.b16 %v527, %v523
    %v704 = vpack.c.b16 %v528, %v524
    %v705 = vpack.c.b16 %v529, %v525
    %v706 = vpack.c.b16 %v534, %v530
    %v707 = vpack.c.b16 %v535, %v531
    %v708 = vpack.c.b16 %v536, %v532
    %v709 = vpack.c.b16 %v537, %v533
    %v710 = vpack.c.b16 %v542, %v538
    %v711 = vpack.c.b16 %v543, %v539
    %v712 = vpack.c.b16 %v544, %v540
    %v713 = vpack.c.b16 %v545, %v541
    %v714 = vpack.c.b16 %v550, %v546
    %v715 = vpack.c.b16 %v551, %v547
    %v716 = vpack.c.b16 %v552, %v548
    %v717 = vpack.c.b16 %v553, %v549
    %v718 = vpack.c.b16 %v558, %v554
    %v719 = vpack.c.b16 %v559, %v555
    %v720 = vpack.c.b16 %v560, %v556
    %v721 = vpack.c.b16 %v561, %v557
    %v722 = vpack.c.b16 %v566, %v562
    %v723 = vpack.c.b16 %v567, %v563
    %v724 = vpack.c.b16 %v568, %v564
    %v725 = vpack.c.b16 %v569, %v565
    %v726 = vpack.c.b16 %v574, %v570
    %v727 = vpack.c.b16 %v575, %v571
    %v728 = vpack.c.b16 %v576, %v572
    %v729 = vpack.c.b16 %v577, %v573
    %v730 = vpack.c.b16 %v582, %v578
    %v731 = vpack.c.b16 %v583, %v579
    %v732 = vpack.c.b16 %v584, %v580
    %v733 = vpack.c.b16 %v585, %v581
    %v734 = vpack.c.b16 %v590, %v586
    %v735 = vpack.c.b16 %v591, %v587
    %v736 = vpack.c.b16 %v592, %v588
    %v737 = vpack.c.b16 %v593, %v589
    %v738 = vpack.c.b16 %v598, %v594
    %v739 = vpack.c.b16 %v599, %v595
    %v740 = vpack.c.b16 %v600, %v596
    %v741 = vpack.c.b16 %v601, %v597
    %v742 = vpack.c.b16 %v606, %v602
    %v743 = vpack.c.b16 %v607, %v603
    %v744 = vpack.c.b16 %v608, %v604
    %v745 = vpack.c.b16 %v609, %v605
    %v746 = vpack.c.b16 %v614, %v610
    %v747 = vpack.c.b16 %v615, %v611
    %v748 = vpack.c.b16 %v616, %v612
    %v749 = vpack.c.b16 %v617, %v613
    %v750 = vpack.c.b16 %v622, %v618
    %v751 = vpack.c.b16 %v623, %v619
    %v752 = vpack.c.b16 %v624, %v620
    %v753 = vpack.c.b16 %v625, %v621
    %882 = vmatprep.subr.bf16.mxu0 %v655
    %883 = vmatpush1.bf16.msra.mxu0 %v654
    %884 = vmatprep.subr.bf16.mxu0 %v651
    %885 = vmatpush1.bf16.msra.mxu0 %v650
    %886 = vmatprep.subr.bf16.mxu0 %v647
    %887 = vmatpush1.bf16.msra.mxu0 %v646
    %888 = vmatprep.subr.bf16.mxu0 %v643
    %889 = vmatpush1.bf16.msra.mxu0 %v642
    %890 = vmatprep.subr.bf16.mxu0 %v639
    %891 = vmatpush1.bf16.msra.mxu0 %v638
    %892 = vmatprep.subr.bf16.mxu0 %v635
    %893 = vmatpush1.bf16.msra.mxu0 %v634
    %894 = vmatprep.subr.bf16.mxu0 %v631
    %895 = vmatpush1.bf16.msra.mxu0 %v630
    %896 = vmatprep.subr.bf16.mxu0 %v627
    %897 = vmatpush1.bf16.msra.mxu0 %v626
    %898 = vmatprep.subr.bf16.mxu0 %v687
    %899 = vmatpush2.bf16.msra.mxu0 %v686
    %900 = vmatprep.subr.bf16.mxu0 %v683
    %901 = vmatpush2.bf16.msra.mxu0 %v682
    %902 = vmatprep.subr.bf16.mxu0 %v679
    %903 = vmatpush2.bf16.msra.mxu0 %v678
    %904 = vmatprep.subr.bf16.mxu0 %v675
    %905 = vmatpush2.bf16.msra.mxu0 %v674
    %906 = vmatprep.subr.bf16.mxu0 %v671
    %907 = vmatpush2.bf16.msra.mxu0 %v670
    %908 = vmatprep.subr.bf16.mxu0 %v667
    %909 = vmatpush2.bf16.msra.mxu0 %v666
    %910 = vmatprep.subr.bf16.mxu0 %v663
    %911 = vmatpush2.bf16.msra.mxu0 %v662
    %912 = vmatprep.subr.bf16.mxu0 %v659
    %913 = vmatpush2.bf16.msra.mxu0 %v658
    %914 = vmatprep.mubr.bf16.mxu0 %v82
    %915 = vmatmul.mubr.bf16.gmra.mxu0 %v81
    %v916 = vpop.f32.mrf.mxu0
    %v917 = vadd.f32 %v225, %v916
    %v918 = vpop.f32.mrf.mxu0
    %v919 = vadd.f32 %v229, %v918
    %v920 = vpop.f32.mrf.mxu0
    %v921 = vpop.f32.mrf.mxu0
    %922 = vdwg.mxu0
    %923 = vmatprep.subr.bf16.mxu0 %v719
    %924 = vmatpush1.bf16.msra.mxu0 %v718
    %925 = vmatprep.subr.bf16.mxu0 %v715
    %926 = vmatpush1.bf16.msra.mxu0 %v714
    %927 = vmatprep.subr.bf16.mxu0 %v711
    %928 = vmatpush1.bf16.msra.mxu0 %v710
    %929 = vmatprep.subr.bf16.mxu0 %v707
    %930 = vmatpush1.bf16.msra.mxu0 %v706
    %931 = vmatprep.subr.bf16.mxu0 %v703
    %932 = vmatpush1.bf16.msra.mxu0 %v702
    %933 = vmatprep.subr.bf16.mxu0 %v699
    %934 = vmatpush1.bf16.msra.mxu0 %v698
    %935 = vmatprep.subr.bf16.mxu0 %v695
    %936 = vmatpush1.bf16.msra.mxu0 %v694
    %937 = vmatprep.subr.bf16.mxu0 %v691
    %938 = vmatpush1.bf16.msra.mxu0 %v690
    %939 = vmatprep.subr.bf16.mxu0 %v751
    %940 = vmatpush2.bf16.msra.mxu0 %v750
    %941 = vmatprep.subr.bf16.mxu0 %v747
    %942 = vmatpush2.bf16.msra.mxu0 %v746
    %943 = vmatprep.subr.bf16.mxu0 %v743
    %944 = vmatpush2.bf16.msra.mxu0 %v742
    %945 = vmatprep.subr.bf16.mxu0 %v739
    %946 = vmatpush2.bf16.msra.mxu0 %v738
    %947 = vmatprep.subr.bf16.mxu0 %v735
    %948 = vmatpush2.bf16.msra.mxu0 %v734
    %949 = vmatprep.subr.bf16.mxu0 %v731
    %950 = vmatpush2.bf16.msra.mxu0 %v730
    %951 = vmatprep.subr.bf16.mxu0 %v727
    %952 = vmatpush2.bf16.msra.mxu0 %v726
    %953 = vmatprep.subr.bf16.mxu0 %v723
    %954 = vmatpush2.bf16.msra.mxu0 %v722
    %955 = vmatprep.mubr.bf16.mxu0 %v89
    %956 = vmatmul.mubr.bf16.gmra.mxu0 %v88
    %v957 = vpop.f32.mrf.mxu0
    %v958 = vadd.f32 %v917, %v957
    %v959 = vpop.f32.mrf.mxu0
    %v960 = vadd.f32 %v919, %v959
    %v961 = vpop.f32.mrf.mxu0
    %v962 = vpop.f32.mrf.mxu0
    %963 = vdwg.mxu0
    %964 = vmatprep.subr.bf16.mxu0 %v657
    %965 = vmatpush1.bf16.msra.mxu0 %v656
    %966 = vmatprep.subr.bf16.mxu0 %v653
    %967 = vmatpush1.bf16.msra.mxu0 %v652
    %968 = vmatprep.subr.bf16.mxu0 %v649
    %969 = vmatpush1.bf16.msra.mxu0 %v648
    %970 = vmatprep.subr.bf16.mxu0 %v645
    %971 = vmatpush1.bf16.msra.mxu0 %v644
    %972 = vmatprep.subr.bf16.mxu0 %v641
    %973 = vmatpush1.bf16.msra.mxu0 %v640
    %974 = vmatprep.subr.bf16.mxu0 %v637
    %975 = vmatpush1.bf16.msra.mxu0 %v636
    %976 = vmatprep.subr.bf16.mxu0 %v633
    %977 = vmatpush1.bf16.msra.mxu0 %v632
    %978 = vmatprep.subr.bf16.mxu0 %v629
    %979 = vmatpush1.bf16.msra.mxu0 %v628
    %980 = vmatprep.subr.bf16.mxu0 %v689
    %981 = vmatpush2.bf16.msra.mxu0 %v688
    %982 = vmatprep.subr.bf16.mxu0 %v685
    %983 = vmatpush2.bf16.msra.mxu0 %v684
    %984 = vmatprep.subr.bf16.mxu0 %v681
    %985 = vmatpush2.bf16.msra.mxu0 %v680
    %986 = vmatprep.subr.bf16.mxu0 %v677
    %987 = vmatpush2.bf16.msra.mxu0 %v676
    %988 = vmatprep.subr.bf16.mxu0 %v673
    %989 = vmatpush2.bf16.msra.mxu0 %v672
    %990 = vmatprep.subr.bf16.mxu0 %v669
    %991 = vmatpush2.bf16.msra.mxu0 %v668
    %992 = vmatprep.subr.bf16.mxu0 %v665
    %993 = vmatpush2.bf16.msra.mxu0 %v664
    %994 = vmatprep.subr.bf16.mxu0 %v661
    %995 = vmatpush2.bf16.msra.mxu0 %v660
    %996 = vmatprep.mubr.bf16.mxu0 %v82
    %997 = vmatmul.mubr.bf16.gmra.mxu0 %v81
    %v998 = vpop.f32.mrf.mxu0
    %v999 = vadd.f32 %v233, %v998
    %v1000 = vpop.f32.mrf.mxu0
    %v1001 = vadd.f32 %v237, %v1000
    %v1002 = vpop.f32.mrf.mxu0
    %v1003 = vpop.f32.mrf.mxu0
    %1004 = vdwg.mxu0
    %1005 = vmatprep.subr.bf16.mxu0 %v721
    %1006 = vmatpush1.bf16.msra.mxu0 %v720
    %1007 = vmatprep.subr.bf16.mxu0 %v717
    %1008 = vmatpush1.bf16.msra.mxu0 %v716
    %1009 = vmatprep.subr.bf16.mxu0 %v713
    %1010 = vmatpush1.bf16.msra.mxu0 %v712
    %1011 = vmatprep.subr.bf16.mxu0 %v709
    %1012 = vmatpush1.bf16.msra.mxu0 %v708
    %1013 = vmatprep.subr.bf16.mxu0 %v705
    %1014 = vmatpush1.bf16.msra.mxu0 %v704
    %1015 = vmatprep.subr.bf16.mxu0 %v701
    %1016 = vmatpush1.bf16.msra.mxu0 %v700
    %1017 = vmatprep.subr.bf16.mxu0 %v697
    %1018 = vmatpush1.bf16.msra.mxu0 %v696
    %1019 = vmatprep.subr.bf16.mxu0 %v693
    %1020 = vmatpush1.bf16.msra.mxu0 %v692
    %1021 = vmatprep.subr.bf16.mxu0 %v753
    %1022 = vmatpush2.bf16.msra.mxu0 %v752
    %1023 = vmatprep.subr.bf16.mxu0 %v749
    %1024 = vmatpush2.bf16.msra.mxu0 %v748
    %1025 = vmatprep.subr.bf16.mxu0 %v745
    %1026 = vmatpush2.bf16.msra.mxu0 %v744
    %1027 = vmatprep.subr.bf16.mxu0 %v741
    %1028 = vmatpush2.bf16.msra.mxu0 %v740
    %1029 = vmatprep.subr.bf16.mxu0 %v737
    %1030 = vmatpush2.bf16.msra.mxu0 %v736
    %1031 = vmatprep.subr.bf16.mxu0 %v733
    %1032 = vmatpush2.bf16.msra.mxu0 %v732
    %1033 = vmatprep.subr.bf16.mxu0 %v729
    %1034 = vmatpush2.bf16.msra.mxu0 %v728
    %1035 = vmatprep.subr.bf16.mxu0 %v725
    %1036 = vmatpush2.bf16.msra.mxu0 %v724
    %1037 = vmatprep.mubr.bf16.mxu0 %v89
    %1038 = vmatmul.mubr.bf16.gmra.mxu0 %v88
    %v1039 = vpop.f32.mrf.mxu0
    %v1040 = vadd.f32 %v999, %v1039
    %v1041 = vpop.f32.mrf.mxu0
    %v1042 = vadd.f32 %v1001, %v1041
    %v1043 = vpop.f32.mrf.mxu0
    %v1044 = vpop.f32.mrf.mxu0
    %1045 = vdwg.mxu0
    %v1046 = vmax.f32 %v958, 0.0
    %v1047 = vmax.f32 %v960, 0.0
    %v1048 = vmax.f32 %v1040, 0.0
    %v1049 = vmax.f32 %v1042, 0.0
    %v1050 = vpack.c.bf16 %v1046, %v1046
    %v1051 = vpack.c.bf16 %v1047, %v1047
    %v1052 = vpack.c.bf16 %v1048, %v1048
    %v1053 = vpack.c.bf16 %v1049, %v1049
    %v1054 = vld [vmem:[#allocation8] sm:$0xf]
    %v1055 = vld [vmem:[#allocation8 + $0x4] sm:$0xf]
    %v1056 = vld [vmem:[#allocation8 + $0x8] sm:$0xf]
    %v1057 = vld [vmem:[#allocation8 + $0xc] sm:$0xf]
    %v1058 = vld [vmem:[#allocation8 + $0x10] sm:$0xf]
    %v1059 = vld [vmem:[#allocation8 + $0x14] sm:$0xf]
    %v1060 = vld [vmem:[#allocation8 + $0x18] sm:$0xf]
    %v1061 = vld [vmem:[#allocation8 + $0x1c] sm:$0xf]
    %v1062 = vld [vmem:[#allocation8 + $0x20] sm:$0xf]
    %v1063 = vld [vmem:[#allocation8 + $0x24] sm:$0xf]
    %v1064 = vld [vmem:[#allocation8 + $0x28] sm:$0xf]
    %v1065 = vld [vmem:[#allocation8 + $0x2c] sm:$0xf]
    %v1066 = vld [vmem:[#allocation8 + $0x30] sm:$0xf]
    %v1067 = vld [vmem:[#allocation8 + $0x34] sm:$0xf]
    %v1068 = vld [vmem:[#allocation8 + $0x38] sm:$0xf]
    %v1069 = vld [vmem:[#allocation8 + $0x3c] sm:$0xf]
    %v1070 = vld [vmem:[#allocation8 + $0x40] sm:$0xf]
    %v1071 = vld [vmem:[#allocation8 + $0x44] sm:$0xf]
    %v1072 = vld [vmem:[#allocation8 + $0x48] sm:$0xf]
    %v1073 = vld [vmem:[#allocation8 + $0x4c] sm:$0xf]
    %v1074 = vld [vmem:[#allocation8 + $0x50] sm:$0xf]
    %v1075 = vld [vmem:[#allocation8 + $0x54] sm:$0xf]
    %v1076 = vld [vmem:[#allocation8 + $0x58] sm:$0xf]
    %v1077 = vld [vmem:[#allocation8 + $0x5c] sm:$0xf]
    %v1078 = vld [vmem:[#allocation8 + $0x60] sm:$0xf]
    %v1079 = vld [vmem:[#allocation8 + $0x64] sm:$0xf]
    %v1080 = vld [vmem:[#allocation8 + $0x68] sm:$0xf]
    %v1081 = vld [vmem:[#allocation8 + $0x6c] sm:$0xf]
    %v1082 = vld [vmem:[#allocation8 + $0x70] sm:$0xf]
    %v1083 = vld [vmem:[#allocation8 + $0x74] sm:$0xf]
    %v1084 = vld [vmem:[#allocation8 + $0x78] sm:$0xf]
    %v1085 = vld [vmem:[#allocation8 + $0x7c] sm:$0xf]
    %v1086 = vld [vmem:[#allocation8 + $0x80] sm:$0xf]
    %v1087 = vld [vmem:[#allocation8 + $0x84] sm:$0xf]
    %v1088 = vld [vmem:[#allocation8 + $0x88] sm:$0xf]
    %v1089 = vld [vmem:[#allocation8 + $0x8c] sm:$0xf]
    %v1090 = vld [vmem:[#allocation8 + $0x90] sm:$0xf]
    %v1091 = vld [vmem:[#allocation8 + $0x94] sm:$0xf]
    %v1092 = vld [vmem:[#allocation8 + $0x98] sm:$0xf]
    %v1093 = vld [vmem:[#allocation8 + $0x9c] sm:$0xf]
    %v1094 = vld [vmem:[#allocation8 + $0xa0] sm:$0xf]
    %v1095 = vld [vmem:[#allocation8 + $0xa4] sm:$0xf]
    %v1096 = vld [vmem:[#allocation8 + $0xa8] sm:$0xf]
    %v1097 = vld [vmem:[#allocation8 + $0xac] sm:$0xf]
    %v1098 = vld [vmem:[#allocation8 + $0xb0] sm:$0xf]
    %v1099 = vld [vmem:[#allocation8 + $0xb4] sm:$0xf]
    %v1100 = vld [vmem:[#allocation8 + $0xb8] sm:$0xf]
    %v1101 = vld [vmem:[#allocation8 + $0xbc] sm:$0xf]
    %v1102 = vld [vmem:[#allocation8 + $0xc0] sm:$0xf]
    %v1103 = vld [vmem:[#allocation8 + $0xc4] sm:$0xf]
    %v1104 = vld [vmem:[#allocation8 + $0xc8] sm:$0xf]
    %v1105 = vld [vmem:[#allocation8 + $0xcc] sm:$0xf]
    %v1106 = vld [vmem:[#allocation8 + $0xd0] sm:$0xf]
    %v1107 = vld [vmem:[#allocation8 + $0xd4] sm:$0xf]
    %v1108 = vld [vmem:[#allocation8 + $0xd8] sm:$0xf]
    %v1109 = vld [vmem:[#allocation8 + $0xdc] sm:$0xf]
    %v1110 = vld [vmem:[#allocation8 + $0xe0] sm:$0xf]
    %v1111 = vld [vmem:[#allocation8 + $0xe4] sm:$0xf]
    %v1112 = vld [vmem:[#allocation8 + $0xe8] sm:$0xf]
    %v1113 = vld [vmem:[#allocation8 + $0xec] sm:$0xf]
    %v1114 = vld [vmem:[#allocation8 + $0xf0] sm:$0xf]
    %v1115 = vld [vmem:[#allocation8 + $0xf4] sm:$0xf]
    %v1116 = vld [vmem:[#allocation8 + $0xf8] sm:$0xf]
    %v1117 = vld [vmem:[#allocation8 + $0xfc] sm:$0xf]
    %v1118 = vld [vmem:[%s5] sm:$0x1]
    %v1120 = vlaneseq
    %v1121 = vshrl.u32 %v1120, 7
    %v1122 = vsub.s32 0, %v1121
    %v1123 = vrot.slane %v1118, %v1122
    %v1189 = vunpack.c.l.b16 %v1054
    %v1190 = vunpack.c.l.b16 %v1055
    %v1191 = vunpack.c.l.b16 %v1056
    %v1192 = vunpack.c.l.b16 %v1057
    %v1193 = vunpack.c.l.b16 %v1058
    %v1194 = vunpack.c.l.b16 %v1059
    %v1195 = vunpack.c.l.b16 %v1060
    %v1196 = vunpack.c.l.b16 %v1061
    %v1197 = vunpack.c.l.b16 %v1062
    %v1198 = vunpack.c.l.b16 %v1063
    %v1199 = vunpack.c.l.b16 %v1064
    %v1200 = vunpack.c.l.b16 %v1065
    %v1201 = vunpack.c.l.b16 %v1066
    %v1202 = vunpack.c.l.b16 %v1067
    %v1203 = vunpack.c.l.b16 %v1068
    %v1204 = vunpack.c.l.b16 %v1069
    %v1205 = vunpack.c.l.b16 %v1070
    %v1206 = vunpack.c.l.b16 %v1071
    %v1207 = vunpack.c.l.b16 %v1072
    %v1208 = vunpack.c.l.b16 %v1073
    %v1209 = vunpack.c.l.b16 %v1074
    %v1210 = vunpack.c.l.b16 %v1075
    %v1211 = vunpack.c.l.b16 %v1076
    %v1212 = vunpack.c.l.b16 %v1077
    %v1213 = vunpack.c.l.b16 %v1078
    %v1214 = vunpack.c.l.b16 %v1079
    %v1215 = vunpack.c.l.b16 %v1080
    %v1216 = vunpack.c.l.b16 %v1081
    %v1217 = vunpack.c.l.b16 %v1082
    %v1218 = vunpack.c.l.b16 %v1083
    %v1219 = vunpack.c.l.b16 %v1084
    %v1220 = vunpack.c.l.b16 %v1085
    %v1221 = vunpack.c.l.b16 %v1086
    %v1222 = vunpack.c.l.b16 %v1087
    %v1223 = vunpack.c.l.b16 %v1088
    %v1224 = vunpack.c.l.b16 %v1089
    %v1225 = vunpack.c.l.b16 %v1090
    %v1226 = vunpack.c.l.b16 %v1091
    %v1227 = vunpack.c.l.b16 %v1092
    %v1228 = vunpack.c.l.b16 %v1093
    %v1229 = vunpack.c.l.b16 %v1094
    %v1230 = vunpack.c.l.b16 %v1095
    %v1231 = vunpack.c.l.b16 %v1096
    %v1232 = vunpack.c.l.b16 %v1097
    %v1233 = vunpack.c.l.b16 %v1098
    %v1234 = vunpack.c.l.b16 %v1099
    %v1235 = vunpack.c.l.b16 %v1100
    %v1236 = vunpack.c.l.b16 %v1101
    %v1237 = vunpack.c.l.b16 %v1102
    %v1238 = vunpack.c.l.b16 %v1103
    %v1239 = vunpack.c.l.b16 %v1104
    %v1240 = vunpack.c.l.b16 %v1105
    %v1241 = vunpack.c.l.b16 %v1106
    %v1242 = vunpack.c.l.b16 %v1107
    %v1243 = vunpack.c.l.b16 %v1108
    %v1244 = vunpack.c.l.b16 %v1109
    %v1245 = vunpack.c.l.b16 %v1110
    %v1246 = vunpack.c.l.b16 %v1111
    %v1247 = vunpack.c.l.b16 %v1112
    %v1248 = vunpack.c.l.b16 %v1113
    %v1249 = vunpack.c.l.b16 %v1114
    %v1250 = vunpack.c.l.b16 %v1115
    %v1251 = vunpack.c.l.b16 %v1116
    %v1252 = vunpack.c.l.b16 %v1117
    %v1253 = vpack.c.b16 %v1190, %v1189
    %v1254 = vpack.c.b16 %v1192, %v1191
    %v1255 = vpack.c.b16 %v1194, %v1193
    %v1256 = vpack.c.b16 %v1196, %v1195
    %v1257 = vpack.c.b16 %v1198, %v1197
    %v1258 = vpack.c.b16 %v1200, %v1199
    %v1259 = vpack.c.b16 %v1202, %v1201
    %v1260 = vpack.c.b16 %v1204, %v1203
    %v1261 = vpack.c.b16 %v1206, %v1205
    %v1262 = vpack.c.b16 %v1208, %v1207
    %v1263 = vpack.c.b16 %v1210, %v1209
    %v1264 = vpack.c.b16 %v1212, %v1211
    %v1265 = vpack.c.b16 %v1214, %v1213
    %v1266 = vpack.c.b16 %v1216, %v1215
    %v1267 = vpack.c.b16 %v1218, %v1217
    %v1268 = vpack.c.b16 %v1220, %v1219
    %v1269 = vpack.c.b16 %v1222, %v1221
    %v1270 = vpack.c.b16 %v1224, %v1223
    %v1271 = vpack.c.b16 %v1226, %v1225
    %v1272 = vpack.c.b16 %v1228, %v1227
    %v1273 = vpack.c.b16 %v1230, %v1229
    %v1274 = vpack.c.b16 %v1232, %v1231
    %v1275 = vpack.c.b16 %v1234, %v1233
    %v1276 = vpack.c.b16 %v1236, %v1235
    %v1277 = vpack.c.b16 %v1238, %v1237
    %v1278 = vpack.c.b16 %v1240, %v1239
    %v1279 = vpack.c.b16 %v1242, %v1241
    %v1280 = vpack.c.b16 %v1244, %v1243
    %v1281 = vpack.c.b16 %v1246, %v1245
    %v1282 = vpack.c.b16 %v1248, %v1247
    %v1283 = vpack.c.b16 %v1250, %v1249
    %v1284 = vpack.c.b16 %v1252, %v1251
    %1317 = vmatprep.subr.bf16.mxu0 0
    %1318 = vmatpush1.bf16.msra.mxu0 %v1260
    %1319 = vmatprep.subr.bf16.mxu0 0
    %1320 = vmatpush1.bf16.msra.mxu0 %v1259
    %1321 = vmatprep.subr.bf16.mxu0 0
    %1322 = vmatpush1.bf16.msra.mxu0 %v1258
    %1323 = vmatprep.subr.bf16.mxu0 0
    %1324 = vmatpush1.bf16.msra.mxu0 %v1257
    %1325 = vmatprep.subr.bf16.mxu0 0
    %1326 = vmatpush1.bf16.msra.mxu0 %v1256
    %1327 = vmatprep.subr.bf16.mxu0 0
    %1328 = vmatpush1.bf16.msra.mxu0 %v1255
    %1329 = vmatprep.subr.bf16.mxu0 0
    %1330 = vmatpush1.bf16.msra.mxu0 %v1254
    %1331 = vmatprep.subr.bf16.mxu0 0
    %1332 = vmatpush1.bf16.msra.mxu0 %v1253
    %1333 = vmatprep.subr.bf16.mxu0 0
    %1334 = vmatpush2.bf16.msra.mxu0 %v1268
    %1335 = vmatprep.subr.bf16.mxu0 0
    %1336 = vmatpush2.bf16.msra.mxu0 %v1267
    %1337 = vmatprep.subr.bf16.mxu0 0
    %1338 = vmatpush2.bf16.msra.mxu0 %v1266
    %1339 = vmatprep.subr.bf16.mxu0 0
    %1340 = vmatpush2.bf16.msra.mxu0 %v1265
    %1341 = vmatprep.subr.bf16.mxu0 0
    %1342 = vmatpush2.bf16.msra.mxu0 %v1264
    %1343 = vmatprep.subr.bf16.mxu0 0
    %1344 = vmatpush2.bf16.msra.mxu0 %v1263
    %1345 = vmatprep.subr.bf16.mxu0 0
    %1346 = vmatpush2.bf16.msra.mxu0 %v1262
    %1347 = vmatprep.subr.bf16.mxu0 0
    %1348 = vmatpush2.bf16.msra.mxu0 %v1261
    %1349 = vmatprep.mubr.bf16.mxu0 %v1051
    %1350 = vmatmul.mubr.bf16.gmra.mxu0 %v1050
    %v1351 = vpop.f32.mrf.mxu0
    %v1352 = vadd.f32 %v1123, %v1351
    %v1353 = vpop.f32.mrf.mxu0
    %v1354 = vpop.f32.mrf.mxu0
    %v1355 = vpop.f32.mrf.mxu0
    %1356 = vdwg.mxu0
    %1357 = vmatprep.subr.bf16.mxu0 0
    %1358 = vmatpush1.bf16.msra.mxu0 %v1276
    %1359 = vmatprep.subr.bf16.mxu0 0
    %1360 = vmatpush1.bf16.msra.mxu0 %v1275
    %1361 = vmatprep.subr.bf16.mxu0 0
    %1362 = vmatpush1.bf16.msra.mxu0 %v1274
    %1363 = vmatprep.subr.bf16.mxu0 0
    %1364 = vmatpush1.bf16.msra.mxu0 %v1273
    %1365 = vmatprep.subr.bf16.mxu0 0
    %1366 = vmatpush1.bf16.msra.mxu0 %v1272
    %1367 = vmatprep.subr.bf16.mxu0 0
    %1368 = vmatpush1.bf16.msra.mxu0 %v1271
    %1369 = vmatprep.subr.bf16.mxu0 0
    %1370 = vmatpush1.bf16.msra.mxu0 %v1270
    %1371 = vmatprep.subr.bf16.mxu0 0
    %1372 = vmatpush1.bf16.msra.mxu0 %v1269
    %1373 = vmatprep.subr.bf16.mxu0 0
    %1374 = vmatpush2.bf16.msra.mxu0 %v1284
    %1375 = vmatprep.subr.bf16.mxu0 0
    %1376 = vmatpush2.bf16.msra.mxu0 %v1283
    %1377 = vmatprep.subr.bf16.mxu0 0
    %1378 = vmatpush2.bf16.msra.mxu0 %v1282
    %1379 = vmatprep.subr.bf16.mxu0 0
    %1380 = vmatpush2.bf16.msra.mxu0 %v1281
    %1381 = vmatprep.subr.bf16.mxu0 0
    %1382 = vmatpush2.bf16.msra.mxu0 %v1280
    %1383 = vmatprep.subr.bf16.mxu0 0
    %1384 = vmatpush2.bf16.msra.mxu0 %v1279
    %1385 = vmatprep.subr.bf16.mxu0 0
    %1386 = vmatpush2.bf16.msra.mxu0 %v1278
    %1387 = vmatprep.subr.bf16.mxu0 0
    %1388 = vmatpush2.bf16.msra.mxu0 %v1277
    %1389 = vmatprep.mubr.bf16.mxu0 %v1053
    %1390 = vmatmul.mubr.bf16.gmra.mxu0 %v1052
    %v1391 = vpop.f32.mrf.mxu0
    %v1392 = vadd.f32 %v1352, %v1391
    %v1393 = vpop.f32.mrf.mxu0
    %v1394 = vpop.f32.mrf.mxu0
    %v1395 = vpop.f32.mrf.mxu0
    %1396 = vdwg.mxu0
    %1397 = vst [vmem:[#allocation10] sm:$0xff] %v1392
    // Predicated region
    $region42: #{tpu_custom_call.1} parent=1 // pred_check
      _
    $region43: #{tpu_custom_call.1} parent=1 // pred_check_branch
      %1399 = sbr.rel (0) target = $region45
    $region44: #{tpu_custom_call.1} parent=1 // pred_region
      %s1401 = ssub.s32 128, 128
      %1402 = vsyncadd [#allocation4], %s1401
      %s1404 = sshll.u32 [#allocation10], 4
      %s1405 = int_to_ptr.vmem [resolvable:$true] %s1404
      %1407 = dma.vmem_to_hbm [thread:$0]  %s1405, 128, %s6, [#allocation4]
    $region45: #{tpu_custom_call.1} parent=1 // pred_fallthru
      _
    // Predicated region
    $region46: #{tpu_custom_call.1} parent=1 // pred_check
      _
    $region47: #{tpu_custom_call.1} parent=1 // pred_check_branch
      %1409 = sbr.rel (0) target = $region49
    $region48: #{tpu_custom_call.1} parent=1 // pred_region
      %1410 = dma.done [#allocation4], 128
    $region49: #{tpu_custom_call.1} parent=1 // pred_fallthru
      _
    %1411 = vsyncpa [#allocation3], 1
    %1412 = vsyncpa [#allocation6], 1
    %1413 = vsyncpa [#allocation9], 1
    %1414 = vsyncpa [#allocation4], 1

</llo_original>
